<compile_context>
chip_gen: v6e
topology: v6e:2x2x1
jax: 0.10.0
libtpu: 0.0.40
codegen_flags: <defaults>
</compile_context>

<pallas_src>
import functools

import jax
import jax.numpy as jnp
from jax import lax
from jax.experimental import pallas as pl
from jax.experimental.pallas import tpu as pltpu


NEG_SLOPE = 0.01                   # PyTorch nn.LeakyReLU default negative_slope
LANE_DENSE_OUT_MAX_BATCH = 4096    # below this, keep the 128-lane padded output


def _leaky_relu(h):
    return jnp.where(h > 0, h, NEG_SLOPE * h)


def _round_up(n, m):
    return ((n + m - 1) // m) * m


def g2d_kernel(x_ref, w1_ref, b1_ref, w2_ref, b2_ref, w3_ref, b3_ref, o_ref):
    x = x_ref[...]                                     # (TB, 1)
    # layer 1: Linear(1, F) + LeakyReLU.  K=1 contraction == outer product ->
    # keep it on the VPU (broadcast mul+add), no MXU push/pop round-trip.
    h1 = _leaky_relu(x * w1_ref[...] + b1_ref[...])    # (TB,1)*(1,Fp) -> (TB,Fp)
    # layer 2: Linear(F, F) + LeakyReLU (lane-dense 128-multiple tiles on the MXU)
    h2 = jnp.dot(h1, w2_ref[...], preferred_element_type=jnp.float32) + b2_ref[...]
    h2 = _leaky_relu(h2)
    # layer 3: Linear(F, C) + Tanh
    h3 = jnp.dot(h2, w3_ref[...], preferred_element_type=jnp.float32) + b3_ref[...]
    # Store only the lanes the output block asks for: the padded Cp block
    # (small/medium B) keeps stores unmasked & lane-dense; the unpadded C block
    # (huge B) trades a few masked vst for ~64x less HBM writeback.
    c_out = o_ref.shape[-1]
    o_ref[...] = jnp.tanh(h3[:, :c_out]).astype(o_ref.dtype)


def prepare_params(params):
    """One-time lane-dense (128-multiple) padding of weights/biases.

    Do this ONCE per parameter set, not per forward call: at F=32/C=2 the
    per-call padding ops would otherwise dominate wall clock.
    """
    w1, b1, w2, b2, w3, b3 = params
    F = w1.shape[1]
    C = w3.shape[1]
    Fp = _round_up(F, 128)
    Cp = _round_up(C, 128)
    f32 = jnp.float32
    w1p = jnp.zeros((1, Fp), f32).at[:, :F].set(w1.astype(f32))
    b1p = jnp.zeros((1, Fp), f32).at[:, :F].set(b1.astype(f32))
    w2p = jnp.zeros((Fp, Fp), f32).at[:F, :F].set(w2.astype(f32))
    b2p = jnp.zeros((1, Fp), f32).at[:, :F].set(b2.astype(f32))
    w3p = jnp.zeros((Fp, Cp), f32).at[:F, :C].set(w3.astype(f32))
    b3p = jnp.zeros((1, Cp), f32).at[:, :C].set(b3.astype(f32))
    padded = tuple(jax.device_put(p) for p in (w1p, b1p, w2p, b2p, w3p, b3p))
    return padded, C


def _choose_tiling(B, max_batch_tile):
    """Pick (rows_per_tile, num_tiles).

    * num_tiles kept as small as possible (fixed ~0.35 us cost per grid step)
    * whenever the batch is split, num_tiles is forced even so the "parallel"
      grid axis load-balances across v7x's 2 TensorCores.
    """
    if B <= max_batch_tile:
        nb = 2 if B >= 256 else 1        # split non-trivial batches for v7x
    else:
        nb = pl.cdiv(B, max_batch_tile)
        nb += nb % 2                     # even tile count for the 2 TCs
    TB = _round_up(pl.cdiv(B, nb), 8)    # sublane-aligned rows per tile
    return TB, nb


@functools.partial(jax.jit, static_argnames=("C", "max_batch_tile"))
def _g2d_forward_impl(x, padded_params, *, C, max_batch_tile):
    w1p, b1p, w2p, b2p, w3p, b3p = padded_params
    B = x.shape[0]
    Fp = w2p.shape[0]
    Cp = w3p.shape[1]

    TB, nb = _choose_tiling(B, max_batch_tile)
    Bp = TB * nb

    xp = x.astype(jnp.float32)
    if Bp != B:
        xp = jnp.pad(xp, ((0, Bp - B), (0, 0)))

    # Output layout gate (review item 4): lane-dense padded block for
    # small/medium B, unpadded (TB, C) block for very large B.
    out_cols = Cp if B < LANE_DENSE_OUT_MAX_BATCH else C

    def const(shape):
        # Grid-invariant block: DMA'd once, stays VMEM-resident across steps.
        return pl.BlockSpec(shape, lambda i: (0, 0))

    cost = pl.CostEstimate(
        flops=2 * Bp * Fp * (Fp + Cp) + 2 * Bp * Fp,
        transcendentals=Bp * out_cols,
        bytes_accessed=4 * (Bp * 1 + Fp + Fp * Fp + Fp + Fp * Cp + Cp
                            + Bp * out_cols),
    )

    out = pl.pallas_call(
        g2d_kernel,
        out_shape=jax.ShapeDtypeStruct((Bp, out_cols), jnp.float32),
        grid_spec=pltpu.PrefetchScalarGridSpec(
            num_scalar_prefetch=0,
            grid=(nb,),
            in_specs=[
                pl.BlockSpec((TB, 1), lambda i: (i, 0)),   # x tile
                const((1, Fp)), const((1, Fp)),            # w1, b1
                const((Fp, Fp)), const((1, Fp)),           # w2, b2
                const((Fp, Cp)), const((1, Cp)),           # w3, b3
            ],
            out_specs=pl.BlockSpec((TB, out_cols), lambda i: (i, 0)),
        ),
        compiler_params=pltpu.CompilerParams(
            dimension_semantics=("parallel",),   # shards batch tiles on v7x's 2 TCs
            vmem_limit_bytes=32 * 1024 * 1024,   # explicit: raises v5e's 16 MiB default,
                                                 # well under v7x's 64 MiB physical VMEM
        ),
        cost_estimate=cost,
    )(xp, w1p, b1p, w2p, b2p, w3p, b3p)

    return out[:B, :C]


def g2d_forward(x, prepared, *, max_batch_tile=2048):
    padded_params, C = prepared
    return _g2d_forward_impl(x, padded_params, C=C, max_batch_tile=max_batch_tile)


def init_params(key, feature_dim, channel_dim):
    """Deterministic init mimicking PyTorch Linear default (uniform +-1/sqrt(fan_in))."""
    def linear(key, fan_in, fan_out):
        kw, kb = jax.random.split(key)
        bound = 1.0 / (fan_in ** 0.5)
        w = jax.random.uniform(kw, (fan_in, fan_out), jnp.float32, -bound, bound)
        b = jax.random.uniform(kb, (1, fan_out), jnp.float32, -bound, bound)
        return w, b

    k1, k2, k3 = jax.random.split(key, 3)
    w1, b1 = linear(k1, 1, feature_dim)
    w2, b2 = linear(k2, feature_dim, feature_dim)
    w3, b3 = linear(k3, feature_dim, channel_dim)
    return (w1, b1, w2, b2, w3, b3)


def g2d_reference(x, params):
    """Plain-JAX reference (full f32 precision) for correctness check."""
    w1, b1, w2, b2, w3, b3 = params
    hp = lax.Precision.HIGHEST
    h = _leaky_relu(jnp.dot(x, w1, precision=hp) + b1)
    h = _leaky_relu(jnp.dot(h, w2, precision=hp) + b2)
    return jnp.tanh(jnp.dot(h, w3, precision=hp) + b3)


if __name__ == "__main__":
    key = jax.random.PRNGKey(0)
    kp, kx, kx2 = jax.random.split(key, 3)

    feature_dim = 32
    channel_dim = 2

    params = init_params(kp, feature_dim, channel_dim)
    prepared = prepare_params(params)   # one-time padding, reused by every forward

    # Small case (single grid step, heavy lane padding).
    batch = 8
    x = jax.random.normal(kx, (batch, 1), jnp.float32)   # z ~ N(0,1), latent_dim=1
    out = g2d_forward(x, prepared)
    jax.block_until_ready(out)
    ref = g2d_reference(x, params)
    assert out.shape == (batch, channel_dim)
    assert jnp.allclose(out, ref, atol=1e-4, rtol=1e-4)

    # Larger batch: exercises the batch grid (2 balanced tiles) + row padding.
    batch2 = 1030
    x2 = jax.random.normal(kx2, (batch2, 1), jnp.float32)
    out2 = g2d_forward(x2, prepared)
    jax.block_until_ready(out2)
    ref2 = g2d_reference(x2, params)
    assert out2.shape == (batch2, channel_dim)
    assert jnp.allclose(out2, ref2, atol=1e-4, rtol=1e-4)

    # Second call on the cached jit path (no re-padding, no retrace).
    out3 = g2d_forward(x2, prepared)
    jax.block_until_ready(out3)
    assert jnp.allclose(out3, ref2, atol=1e-4, rtol=1e-4)

    print("KERNEL_OK")
</pallas_src>

<mosaic_0001>
module attributes {stable_mosaic.version = 11 : i64} {
  func.func @g2d_kernel(%arg0: i32, %arg1: memref<8x1xf32, #tpu.memory_space<vmem>>, %arg2: memref<1x128xf32, #tpu.memory_space<vmem>>, %arg3: memref<1x128xf32, #tpu.memory_space<vmem>>, %arg4: memref<128x128xf32, #tpu.memory_space<vmem>>, %arg5: memref<1x128xf32, #tpu.memory_space<vmem>>, %arg6: memref<128x128xf32, #tpu.memory_space<vmem>>, %arg7: memref<1x128xf32, #tpu.memory_space<vmem>>, %arg8: memref<8x128xf32, #tpu.memory_space<vmem>>) attributes {dimension_semantics = [#tpu.dimension_semantics<parallel>], iteration_bounds = array<i64: 1>, scalar_prefetch = 0 : i64, scratch_operands = 0 : i64, tpu.core_type = #tpu.core_type<tc>, window_params = [{transform_indices = @transform_0, window_bounds = array<i64: 8, 1>}, {pipeline_mode = #tpu.pipeline_mode<synchronous>, transform_indices = @transform_1, window_bounds = array<i64: 1, 128>}, {pipeline_mode = #tpu.pipeline_mode<synchronous>, transform_indices = @transform_2, window_bounds = array<i64: 1, 128>}, {pipeline_mode = #tpu.pipeline_mode<synchronous>, transform_indices = @transform_3, window_bounds = array<i64: 128, 128>}, {pipeline_mode = #tpu.pipeline_mode<synchronous>, transform_indices = @transform_4, window_bounds = array<i64: 1, 128>}, {pipeline_mode = #tpu.pipeline_mode<synchronous>, transform_indices = @transform_5, window_bounds = array<i64: 128, 128>}, {pipeline_mode = #tpu.pipeline_mode<synchronous>, transform_indices = @transform_6, window_bounds = array<i64: 1, 128>}, {transform_indices = @transform_7, window_bounds = array<i64: 8, 128>}]} {
    %c0 = arith.constant 0 : index
    %c0_0 = arith.constant 0 : index
    %0 = vector.load %arg1[%c0, %c0_0] : memref<8x1xf32, #tpu.memory_space<vmem>>, vector<8x1xf32>
    %c0_1 = arith.constant 0 : index
    %c0_2 = arith.constant 0 : index
    %1 = vector.load %arg2[%c0_1, %c0_2] : memref<1x128xf32, #tpu.memory_space<vmem>>, vector<1x128xf32>
    %2 = vector.broadcast %0 : vector<8x1xf32> to vector<8x128xf32>
    %3 = vector.broadcast %1 : vector<1x128xf32> to vector<8x128xf32>
    %4 = arith.mulf %2, %3 : vector<8x128xf32>
    %c0_3 = arith.constant 0 : index
    %c0_4 = arith.constant 0 : index
    %5 = vector.load %arg3[%c0_3, %c0_4] : memref<1x128xf32, #tpu.memory_space<vmem>>, vector<1x128xf32>
    %6 = vector.broadcast %5 : vector<1x128xf32> to vector<8x128xf32>
    %7 = arith.addf %4, %6 : vector<8x128xf32>
    %cst = arith.constant 0.000000e+00 : f32
    %8 = vector.broadcast %cst : f32 to vector<8x128xf32>
    %9 = arith.cmpf ogt, %7, %8 : vector<8x128xf32>
    %cst_5 = arith.constant 0.00999999977 : f32
    %10 = vector.broadcast %cst_5 : f32 to vector<8x128xf32>
    %11 = arith.mulf %10, %7 : vector<8x128xf32>
    %12 = arith.select %9, %7, %11 : vector<8x128xi1>, vector<8x128xf32>
    %c0_6 = arith.constant 0 : index
    %c0_7 = arith.constant 0 : index
    %13 = vector.load %arg4[%c0_6, %c0_7] : memref<128x128xf32, #tpu.memory_space<vmem>>, vector<128x128xf32>
    %cst_8 = arith.constant dense<0.000000e+00> : vector<8x128xf32>
    %14 = tpu.matmul %12, %13, %cst_8 {dimension_numbers = #tpu.dot_dimension_numbers<[1], [0], [0], [1], [0, 0, 1, 1], [], []>} : vector<8x128xf32>, vector<128x128xf32>, vector<8x128xf32> -> vector<8x128xf32>
    %c0_9 = arith.constant 0 : index
    %c0_10 = arith.constant 0 : index
    %15 = vector.load %arg5[%c0_9, %c0_10] : memref<1x128xf32, #tpu.memory_space<vmem>>, vector<1x128xf32>
    %16 = vector.broadcast %15 : vector<1x128xf32> to vector<8x128xf32>
    %17 = arith.addf %14, %16 : vector<8x128xf32>
    %cst_11 = arith.constant 0.000000e+00 : f32
    %18 = vector.broadcast %cst_11 : f32 to vector<8x128xf32>
    %19 = arith.cmpf ogt, %17, %18 : vector<8x128xf32>
    %cst_12 = arith.constant 0.00999999977 : f32
    %20 = vector.broadcast %cst_12 : f32 to vector<8x128xf32>
    %21 = arith.mulf %20, %17 : vector<8x128xf32>
    %22 = arith.select %19, %17, %21 : vector<8x128xi1>, vector<8x128xf32>
    %c0_13 = arith.constant 0 : index
    %c0_14 = arith.constant 0 : index
    %23 = vector.load %arg6[%c0_13, %c0_14] : memref<128x128xf32, #tpu.memory_space<vmem>>, vector<128x128xf32>
    %cst_15 = arith.constant dense<0.000000e+00> : vector<8x128xf32>
    %24 = tpu.matmul %22, %23, %cst_15 {dimension_numbers = #tpu.dot_dimension_numbers<[1], [0], [0], [1], [0, 0, 1, 1], [], []>} : vector<8x128xf32>, vector<128x128xf32>, vector<8x128xf32> -> vector<8x128xf32>
    %c0_16 = arith.constant 0 : index
    %c0_17 = arith.constant 0 : index
    %25 = vector.load %arg7[%c0_16, %c0_17] : memref<1x128xf32, #tpu.memory_space<vmem>>, vector<1x128xf32>
    %26 = vector.broadcast %25 : vector<1x128xf32> to vector<8x128xf32>
    %27 = arith.addf %24, %26 : vector<8x128xf32>
    %28 = math.tanh %27 : vector<8x128xf32>
    %c0_18 = arith.constant 0 : index
    %c0_19 = arith.constant 0 : index
    %29 = vector.load %arg8[%c0_18, %c0_19] : memref<8x128xf32, #tpu.memory_space<vmem>>, vector<8x128xf32>
    tpu.vector_store %arg8[%c0_18, %c0_19], %28 {strides = array<i32>} : memref<8x128xf32, #tpu.memory_space<vmem>>, vector<8x128xf32>,
    return
  }
  func.func @transform_0(%arg0: i32) -> (i32, i32) {
    %c0_i32 = arith.constant 0 : i32
    %c0_i32_0 = arith.constant 0 : i32
    return %arg0, %c0_i32 : i32, i32
  }
  func.func @transform_1(%arg0: i32) -> (i32, i32) {
    %c0_i32 = arith.constant 0 : i32
    %c0_i32_0 = arith.constant 0 : i32
    %c0_i32_1 = arith.constant 0 : i32
    return %c0_i32, %c0_i32_0 : i32, i32
  }
  func.func @transform_2(%arg0: i32) -> (i32, i32) {
    %c0_i32 = arith.constant 0 : i32
    %c0_i32_0 = arith.constant 0 : i32
    %c0_i32_1 = arith.constant 0 : i32
    return %c0_i32, %c0_i32_0 : i32, i32
  }
  func.func @transform_3(%arg0: i32) -> (i32, i32) {
    %c0_i32 = arith.constant 0 : i32
    %c0_i32_0 = arith.constant 0 : i32
    %c0_i32_1 = arith.constant 0 : i32
    return %c0_i32, %c0_i32_0 : i32, i32
  }
  func.func @transform_4(%arg0: i32) -> (i32, i32) {
    %c0_i32 = arith.constant 0 : i32
    %c0_i32_0 = arith.constant 0 : i32
    %c0_i32_1 = arith.constant 0 : i32
    return %c0_i32, %c0_i32_0 : i32, i32
  }
  func.func @transform_5(%arg0: i32) -> (i32, i32) {
    %c0_i32 = arith.constant 0 : i32
    %c0_i32_0 = arith.constant 0 : i32
    %c0_i32_1 = arith.constant 0 : i32
    return %c0_i32, %c0_i32_0 : i32, i32
  }
  func.func @transform_6(%arg0: i32) -> (i32, i32) {
    %c0_i32 = arith.constant 0 : i32
    %c0_i32_0 = arith.constant 0 : i32
    %c0_i32_1 = arith.constant 0 : i32
    return %c0_i32, %c0_i32_0 : i32, i32
  }
  func.func @transform_7(%arg0: i32) -> (i32, i32) {
    %c0_i32 = arith.constant 0 : i32
    %c0_i32_0 = arith.constant 0 : i32
    return %arg0, %c0_i32 : i32, i32
  }
}

</mosaic_0001>

<llo_original>
// kernel: _g2d_forward_impl.1
$region0: #{_g2d_forward_impl.1}
  #allocation0 [shape = 'u32[]', space=smem, size = 0x4, offset = 0x4, fixed_abs, tag = 'smem constant byte address 0x4 - core index']
  #allocation1 [shape = 'u32[144,128]{1,0:T(1,128)}', space=vmem, size = 0x12000, scoped, tag = 'internal scratch']
  %s0 = inlined_call_operand.vmem [shape: f32[8,1], index: 0, kind: input, shape index: {}]
  %s1 = inlined_call_operand.vmem [shape: f32[1,128], index: 1, kind: input, shape index: {}]
  %s2 = inlined_call_operand.vmem [shape: f32[1,128], index: 2, kind: input, shape index: {}]
  %s3 = inlined_call_operand.hbm [shape: f32[128,128], index: 3, kind: input, shape index: {}]
  %s4 = inlined_call_operand.vmem [shape: f32[1,128], index: 4, kind: input, shape index: {}]
  %s5 = inlined_call_operand.hbm [shape: f32[128,128], index: 5, kind: input, shape index: {}]
  %s6 = inlined_call_operand.vmem [shape: f32[1,128], index: 6, kind: input, shape index: {}]
  %s7 = inlined_call_operand.vmem [shape: f32[8,128], index: 7, kind: output, shape index: {}]
  %s8 = sld [smem:[#allocation0]]
  $region46: #{_g2d_forward_impl.1} parent=0
    _
  %s10 = ssub.s32 1, %s8
  %s11 = scalar_select 0, %s10, %s8
  $region1: #{_g2d_forward_impl.1} parent=0
    #allocation2 [shape = 'u8[65536]{0}', space=vmem, size = 0x10000, scoped, tag = 'input window, operand 3, single buffered']
    #allocation3 [shape = 's32[1]{0}', space=sflag, size = 0x4, scoped, tag = 'scoped memory for _g2d_forward_impl.1']
    #allocation4 [shape = 'u8[65536]{0}', space=vmem, size = 0x10000, scoped, tag = 'input window, operand 5, single buffered']
    #allocation5 [shape = 's32[1]{0}', space=sflag, size = 0x4, scoped, tag = 'scoped memory for _g2d_forward_impl.1']
    %12 = vsyncpa [#allocation3], 0
    %13 = vsyncpa [#allocation5], 0
    // Predicated region
    $region2: #{_g2d_forward_impl.1} parent=1 // pred_check
      _
    $region3: #{_g2d_forward_impl.1} parent=1 // pred_check_branch
      %15 = sbr.rel (0) target = $region5
    $region4: #{_g2d_forward_impl.1} parent=1 // pred_region
      _
    $region5: #{_g2d_forward_impl.1} parent=1 // pred_fallthru
      _
    // Predicated region
    $region6: #{_g2d_forward_impl.1} parent=1 // pred_check
      _
    $region7: #{_g2d_forward_impl.1} parent=1 // pred_check_branch
      %17 = sbr.rel (0) target = $region9
    $region8: #{_g2d_forward_impl.1} parent=1 // pred_region
      _
    $region9: #{_g2d_forward_impl.1} parent=1 // pred_fallthru
      _
    // Predicated region
    $region10: #{_g2d_forward_impl.1} parent=1 // pred_check
      _
    $region11: #{_g2d_forward_impl.1} parent=1 // pred_check_branch
      %19 = sbr.rel (0) target = $region13
    $region12: #{_g2d_forward_impl.1} parent=1 // pred_region
      _
    $region13: #{_g2d_forward_impl.1} parent=1 // pred_fallthru
      _
    // Predicated region
    $region14: #{_g2d_forward_impl.1} parent=1 // pred_check
      _
    $region15: #{_g2d_forward_impl.1} parent=1 // pred_check_branch
      %21 = sbr.rel (0) target = $region17
    $region16: #{_g2d_forward_impl.1} parent=1 // pred_region
      %s23 = ssub.s32 2048, 2048
      %24 = vsyncadd [#allocation3], %s23
      %s25 = sshll.u32 [#allocation2], 4
      %s26 = int_to_ptr.vmem [resolvable:$true] %s25
      %31 = dma.hbm_to_vmem [thread:$0]  %s3, 2048, %s26, [#allocation3], 128, 128, 8
    $region17: #{_g2d_forward_impl.1} parent=1 // pred_fallthru
      _
    // Predicated region
    $region18: #{_g2d_forward_impl.1} parent=1 // pred_check
      _
    $region19: #{_g2d_forward_impl.1} parent=1 // pred_check_branch
      %33 = sbr.rel (0) target = $region21
    $region20: #{_g2d_forward_impl.1} parent=1 // pred_region
      _
    $region21: #{_g2d_forward_impl.1} parent=1 // pred_fallthru
      _
    // Predicated region
    $region22: #{_g2d_forward_impl.1} parent=1 // pred_check
      _
    $region23: #{_g2d_forward_impl.1} parent=1 // pred_check_branch
      %35 = sbr.rel (0) target = $region25
    $region24: #{_g2d_forward_impl.1} parent=1 // pred_region
      %s37 = ssub.s32 2048, 2048
      %38 = vsyncadd [#allocation5], %s37
      %s39 = sshll.u32 [#allocation4], 4
      %s40 = int_to_ptr.vmem [resolvable:$true] %s39
      %45 = dma.hbm_to_vmem [thread:$0]  %s5, 2048, %s40, [#allocation5], 128, 128, 8
    $region25: #{_g2d_forward_impl.1} parent=1 // pred_fallthru
      _
    // Predicated region
    $region26: #{_g2d_forward_impl.1} parent=1 // pred_check
      _
    $region27: #{_g2d_forward_impl.1} parent=1 // pred_check_branch
      %47 = sbr.rel (0) target = $region29
    $region28: #{_g2d_forward_impl.1} parent=1 // pred_region
      _
    $region29: #{_g2d_forward_impl.1} parent=1 // pred_fallthru
      _
    // Predicated region
    $region30: #{_g2d_forward_impl.1} parent=1 // pred_check
      _
    $region31: #{_g2d_forward_impl.1} parent=1 // pred_check_branch
      %49 = sbr.rel (0) target = $region33
    $region32: #{_g2d_forward_impl.1} parent=1 // pred_region
      %50 = dma.done [#allocation3], 2048
    $region33: #{_g2d_forward_impl.1} parent=1 // pred_fallthru
      _
    // Predicated region
    $region34: #{_g2d_forward_impl.1} parent=1 // pred_check
      _
    $region35: #{_g2d_forward_impl.1} parent=1 // pred_check_branch
      %52 = sbr.rel (0) target = $region37
    $region36: #{_g2d_forward_impl.1} parent=1 // pred_region
      %53 = dma.done [#allocation5], 2048
    $region37: #{_g2d_forward_impl.1} parent=1 // pred_fallthru
      _
    %v54 = vld [vmem:[%s0] sm:$0xff]
    %v55 = vld [vmem:[%s1] sm:$0x1]
    %57 = vset.pattern.permute.xlu0 0
    %58 = vperm.xlu0 %57, %v54
    %v59 = vpop.permute.xlu0 %58
    %v62 = vlaneseq
    %v63 = vshrl.u32 %v62, 7
    %v64 = vsub.s32 0, %v63
    %v65 = vrot.slane %v55, %v64
    %v67 = vmul.f32 %v59, %v65
    %v68 = vld [vmem:[%s2] sm:$0x1]
    %v70 = vlaneseq
    %v71 = vshrl.u32 %v70, 7
    %v72 = vsub.s32 0, %v71
    %v73 = vrot.slane %v68, %v72
    %v75 = vadd.f32 %v67, %v73
    %vm76 = vcmp.gt.f32.partialorder %v75, 0.0
    %v77 = vmul.f32 %v75, 0.01
    %v78 = vsel %vm76, %v75, %v77
    %v79 = vld [vmem:[#allocation2] sm:$0xff]
    %v80 = vld [vmem:[#allocation2 + $0x8] sm:$0xff]
    %v81 = vld [vmem:[#allocation2 + $0x10] sm:$0xff]
    %v82 = vld [vmem:[#allocation2 + $0x18] sm:$0xff]
    %v83 = vld [vmem:[#allocation2 + $0x20] sm:$0xff]
    %v84 = vld [vmem:[#allocation2 + $0x28] sm:$0xff]
    %v85 = vld [vmem:[#allocation2 + $0x30] sm:$0xff]
    %v86 = vld [vmem:[#allocation2 + $0x38] sm:$0xff]
    %v87 = vld [vmem:[#allocation2 + $0x40] sm:$0xff]
    %v88 = vld [vmem:[#allocation2 + $0x48] sm:$0xff]
    %v89 = vld [vmem:[#allocation2 + $0x50] sm:$0xff]
    %v90 = vld [vmem:[#allocation2 + $0x58] sm:$0xff]
    %v91 = vld [vmem:[#allocation2 + $0x60] sm:$0xff]
    %v92 = vld [vmem:[#allocation2 + $0x68] sm:$0xff]
    %v93 = vld [vmem:[#allocation2 + $0x70] sm:$0xff]
    %v94 = vld [vmem:[#allocation2 + $0x78] sm:$0xff]
    %v95 = vld [vmem:[%s4] sm:$0x1]
    %v97 = vlaneseq
    %v98 = vshrl.u32 %v97, 7
    %v99 = vsub.s32 0, %v98
    %v100 = vrot.slane %v95, %v99
    %102 = vmatprep.subr.mxu0 0.0
    %103 = vmatpush1.msra.mxu0 %v94
    %104 = vmatprep.subr.mxu0 0.0
    %105 = vmatpush1.msra.mxu0 %v93
    %106 = vmatprep.subr.mxu0 0.0
    %107 = vmatpush1.msra.mxu0 %v92
    %108 = vmatprep.subr.mxu0 0.0
    %109 = vmatpush1.msra.mxu0 %v91
    %110 = vmatprep.subr.mxu0 0.0
    %111 = vmatpush1.msra.mxu0 %v90
    %112 = vmatprep.subr.mxu0 0.0
    %113 = vmatpush1.msra.mxu0 %v89
    %114 = vmatprep.subr.mxu0 0.0
    %115 = vmatpush1.msra.mxu0 %v88
    %116 = vmatprep.subr.mxu0 0.0
    %117 = vmatpush1.msra.mxu0 %v87
    %118 = vmatprep.subr.mxu0 0.0
    %119 = vmatpush1.msra.mxu0 %v86
    %120 = vmatprep.subr.mxu0 0.0
    %121 = vmatpush1.msra.mxu0 %v85
    %122 = vmatprep.subr.mxu0 0.0
    %123 = vmatpush1.msra.mxu0 %v84
    %124 = vmatprep.subr.mxu0 0.0
    %125 = vmatpush1.msra.mxu0 %v83
    %126 = vmatprep.subr.mxu0 0.0
    %127 = vmatpush1.msra.mxu0 %v82
    %128 = vmatprep.subr.mxu0 0.0
    %129 = vmatpush1.msra.mxu0 %v81
    %130 = vmatprep.subr.mxu0 0.0
    %131 = vmatpush1.msra.mxu0 %v80
    %132 = vmatprep.subr.mxu0 0.0
    %133 = vmatpush1.msra.mxu0 %v79
    %134 = vmatprep.subr.mxu0 0.0
    %135 = vmatpush2.msra.mxu0 0.0
    %136 = vmatprep.subr.mxu0 0.0
    %137 = vmatpush2.msra.mxu0 0.0
    %138 = vmatprep.subr.mxu0 0.0
    %139 = vmatpush2.msra.mxu0 0.0
    %140 = vmatprep.subr.mxu0 0.0
    %141 = vmatpush2.msra.mxu0 0.0
    %142 = vmatprep.subr.mxu0 0.0
    %143 = vmatpush2.msra.mxu0 0.0
    %144 = vmatprep.subr.mxu0 0.0
    %145 = vmatpush2.msra.mxu0 0.0
    %146 = vmatprep.subr.mxu0 0.0
    %147 = vmatpush2.msra.mxu0 0.0
    %148 = vmatprep.subr.mxu0 0.0
    %149 = vmatpush2.msra.mxu0 0.0
    %150 = vmatprep.subr.mxu0 0.0
    %151 = vmatpush2.msra.mxu0 0.0
    %152 = vmatprep.subr.mxu0 0.0
    %153 = vmatpush2.msra.mxu0 0.0
    %154 = vmatprep.subr.mxu0 0.0
    %155 = vmatpush2.msra.mxu0 0.0
    %156 = vmatprep.subr.mxu0 0.0
    %157 = vmatpush2.msra.mxu0 0.0
    %158 = vmatprep.subr.mxu0 0.0
    %159 = vmatpush2.msra.mxu0 0.0
    %160 = vmatprep.subr.mxu0 0.0
    %161 = vmatpush2.msra.mxu0 0.0
    %162 = vmatprep.subr.mxu0 0.0
    %163 = vmatpush2.msra.mxu0 0.0
    %164 = vmatprep.subr.mxu0 0.0
    %165 = vmatpush2.msra.mxu0 0.0
    %166 = vmatprep.mubr.f32.mxu0 0.0
    %167 = vmatmul.mubr.f32.gmra.mxu0 %v78
    %v168 = vpop.f32.mrf.mxu0
    %v169 = vadd.f32 %v100, %v168
    %v170 = vpop.f32.mrf.mxu0
    %171 = vdwg.mxu0
    %vm172 = vcmp.gt.f32.partialorder %v169, 0.0
    %v173 = vmul.f32 %v169, 0.01
    %v174 = vsel %vm172, %v169, %v173
    %v175 = vld [vmem:[#allocation4] sm:$0xff]
    %v176 = vld [vmem:[#allocation4 + $0x8] sm:$0xff]
    %v177 = vld [vmem:[#allocation4 + $0x10] sm:$0xff]
    %v178 = vld [vmem:[#allocation4 + $0x18] sm:$0xff]
    %v179 = vld [vmem:[#allocation4 + $0x20] sm:$0xff]
    %v180 = vld [vmem:[#allocation4 + $0x28] sm:$0xff]
    %v181 = vld [vmem:[#allocation4 + $0x30] sm:$0xff]
    %v182 = vld [vmem:[#allocation4 + $0x38] sm:$0xff]
    %v183 = vld [vmem:[#allocation4 + $0x40] sm:$0xff]
    %v184 = vld [vmem:[#allocation4 + $0x48] sm:$0xff]
    %v185 = vld [vmem:[#allocation4 + $0x50] sm:$0xff]
    %v186 = vld [vmem:[#allocation4 + $0x58] sm:$0xff]
    %v187 = vld [vmem:[#allocation4 + $0x60] sm:$0xff]
    %v188 = vld [vmem:[#allocation4 + $0x68] sm:$0xff]
    %v189 = vld [vmem:[#allocation4 + $0x70] sm:$0xff]
    %v190 = vld [vmem:[#allocation4 + $0x78] sm:$0xff]
    %v191 = vld [vmem:[%s6] sm:$0x1]
    %v193 = vlaneseq
    %v194 = vshrl.u32 %v193, 7
    %v195 = vsub.s32 0, %v194
    %v196 = vrot.slane %v191, %v195
    %198 = vmatprep.subr.mxu0 0.0
    %199 = vmatpush1.msra.mxu0 %v190
    %200 = vmatprep.subr.mxu0 0.0
    %201 = vmatpush1.msra.mxu0 %v189
    %202 = vmatprep.subr.mxu0 0.0
    %203 = vmatpush1.msra.mxu0 %v188
    %204 = vmatprep.subr.mxu0 0.0
    %205 = vmatpush1.msra.mxu0 %v187
    %206 = vmatprep.subr.mxu0 0.0
    %207 = vmatpush1.msra.mxu0 %v186
    %208 = vmatprep.subr.mxu0 0.0
    %209 = vmatpush1.msra.mxu0 %v185
    %210 = vmatprep.subr.mxu0 0.0
    %211 = vmatpush1.msra.mxu0 %v184
    %212 = vmatprep.subr.mxu0 0.0
    %213 = vmatpush1.msra.mxu0 %v183
    %214 = vmatprep.subr.mxu0 0.0
    %215 = vmatpush1.msra.mxu0 %v182
    %216 = vmatprep.subr.mxu0 0.0
    %217 = vmatpush1.msra.mxu0 %v181
    %218 = vmatprep.subr.mxu0 0.0
    %219 = vmatpush1.msra.mxu0 %v180
    %220 = vmatprep.subr.mxu0 0.0
    %221 = vmatpush1.msra.mxu0 %v179
    %222 = vmatprep.subr.mxu0 0.0
    %223 = vmatpush1.msra.mxu0 %v178
    %224 = vmatprep.subr.mxu0 0.0
    %225 = vmatpush1.msra.mxu0 %v177
    %226 = vmatprep.subr.mxu0 0.0
    %227 = vmatpush1.msra.mxu0 %v176
    %228 = vmatprep.subr.mxu0 0.0
    %229 = vmatpush1.msra.mxu0 %v175
    %230 = vmatprep.subr.mxu0 0.0
    %231 = vmatpush2.msra.mxu0 0.0
    %232 = vmatprep.subr.mxu0 0.0
    %233 = vmatpush2.msra.mxu0 0.0
    %234 = vmatprep.subr.mxu0 0.0
    %235 = vmatpush2.msra.mxu0 0.0
    %236 = vmatprep.subr.mxu0 0.0
    %237 = vmatpush2.msra.mxu0 0.0
    %238 = vmatprep.subr.mxu0 0.0
    %239 = vmatpush2.msra.mxu0 0.0
    %240 = vmatprep.subr.mxu0 0.0
    %241 = vmatpush2.msra.mxu0 0.0
    %242 = vmatprep.subr.mxu0 0.0
    %243 = vmatpush2.msra.mxu0 0.0
    %244 = vmatprep.subr.mxu0 0.0
    %245 = vmatpush2.msra.mxu0 0.0
    %246 = vmatprep.subr.mxu0 0.0
    %247 = vmatpush2.msra.mxu0 0.0
    %248 = vmatprep.subr.mxu0 0.0
    %249 = vmatpush2.msra.mxu0 0.0
    %250 = vmatprep.subr.mxu0 0.0
    %251 = vmatpush2.msra.mxu0 0.0
    %252 = vmatprep.subr.mxu0 0.0
    %253 = vmatpush2.msra.mxu0 0.0
    %254 = vmatprep.subr.mxu0 0.0
    %255 = vmatpush2.msra.mxu0 0.0
    %256 = vmatprep.subr.mxu0 0.0
    %257 = vmatpush2.msra.mxu0 0.0
    %258 = vmatprep.subr.mxu0 0.0
    %259 = vmatpush2.msra.mxu0 0.0
    %260 = vmatprep.subr.mxu0 0.0
    %261 = vmatpush2.msra.mxu0 0.0
    %262 = vmatprep.mubr.f32.mxu0 0.0
    %263 = vmatmul.mubr.f32.gmra.mxu0 %v174
    %v264 = vpop.f32.mrf.mxu0
    %v265 = vadd.f32 %v196, %v264
    %v266 = vpop.f32.mrf.mxu0
    %267 = vdwg.mxu0
    %v268 = vtanh.pop %v265
    %269 = vst [vmem:[%s7] sm:$0xff] %v268
    // Predicated region
    $region38: #{_g2d_forward_impl.1} parent=1 // pred_check
      _
    $region39: #{_g2d_forward_impl.1} parent=1 // pred_check_branch
      %271 = sbr.rel (0) target = $region41
    $region40: #{_g2d_forward_impl.1} parent=1 // pred_region
      _
    $region41: #{_g2d_forward_impl.1} parent=1 // pred_fallthru
      _
    // Predicated region
    $region42: #{_g2d_forward_impl.1} parent=1 // pred_check
      _
    $region43: #{_g2d_forward_impl.1} parent=1 // pred_check_branch
      %273 = sbr.rel (0) target = $region45
    $region44: #{_g2d_forward_impl.1} parent=1 // pred_region
      _
    $region45: #{_g2d_forward_impl.1} parent=1 // pred_fallthru
      _
    %274 = vsyncpa [#allocation3], 1
    %275 = vsyncpa [#allocation5], 1

</llo_original>
